<compile_context>
chip_gen: v7x
topology: tpu7x:2x2x1
jax: 0.10.0
libtpu: 0.0.40
codegen_flags: <defaults>
</compile_context>

<pallas_src>
import numpy as np
import jax
import jax.numpy as jnp
from jax.experimental import pallas as pl
from jax.experimental.pallas import tpu as pltpu

# ----------------------------- configuration --------------------------------
POOL = (4, 4, 4)                 # pool_size (spatial grid of the graph)
N = POOL[0] * POOL[1] * POOL[2]  # number of graph nodes (64)
B = 2                            # batch
IN_CH = 8                        # in_ch   (channels of f)
G_CH = 4                         # g_ch    (channels of cam)
F_DIM = 8                        # f_dim   (theta/phi projection)
GEO_F_DIM = 8                    # geo_f_dim
G_DIM = 4                        # g_dim   (G / r projection)
P_ENC = 12                       # p_enc_dim (must be divisible by 2*3)
K_SIZE = 3
CONNECTIVITY = 2
NON_LOCAL_ITER = 2
SELF_LOOP = True
RESIDUAL = False
NEG_INF = -1e30
# merge_type = 'scaled_dot_product_geo'
# TODO(synk): other merge_types ('l2', 'heu1', ...) and k_size != 3 (ndimage.zoom
# of the structuring element) are not implemented here.


def _ceil8(x):
    return ((x + 7) // 8) * 8


# ---- packed parameter-slab row offsets (all batch-invariant data, one DMA) ----
R_BIAS = 0                           # (N, N)  geo_dot*inv_scale + adjacency mask
R_INV = N                            # (N, N)  1/sqrt(deg) broadcast along columns
R_WTP = 2 * N                        # (IN_CH, 2*F_DIM)  [theta | phi] weights
R_BTP = R_WTP + _ceil8(IN_CH)        # (1, 2*F_DIM)      [theta | phi] biases
R_M = R_BTP + 8                      # (G_CH, G_CH)      Wg @ Wr (folded G/r)
R_C0 = R_M + _ceil8(G_CH)            # (1, G_CH)         bg @ Wr
R_BR = R_C0 + 8                      # (1, G_CH)         br
SLAB_ROWS = R_BR + 8                 # 168 rows x 64 lanes, f32


# -------------------------- host-side graph glue ----------------------------
def build_adjacency(spatial, k_size, connectivity, self_loop):
    """Replicates PCM.init_graph (nx/dgl/scipy free) as a dense (N, N) mask."""
    assert k_size == 3, "only k_size=3 (no ndimage.zoom) supported"
    offsets = [(dx, dy, dz)
               for dx in (-1, 0, 1) for dy in (-1, 0, 1) for dz in (-1, 0, 1)
               if abs(dx) + abs(dy) + abs(dz) <= connectivity]
    if not self_loop:
        offsets = [o for o in offsets if o != (0, 0, 0)]
    D, H, W = spatial
    n = D * H * W
    adj = np.zeros((n, n), dtype=np.float32)
    for d in range(D):
        for h in range(H):
            for w in range(W):
                dst = (d * H + h) * W + w
                for (dx, dy, dz) in offsets:
                    sd, sh, sw = d + dx, h + dy, w + dz
                    if 0 <= sd < D and 0 <= sh < H and 0 <= sw < W:
                        src = (sd * H + sh) * W + sw
                        adj[dst, src] = 1.0
    deg = adj.sum(axis=1)
    inv_scale = (1.0 / np.sqrt(deg)).astype(np.float32)[:, None]   # (N, 1)
    return adj, inv_scale


def build_geo_feature(spatial, p_enc_dim):
    """Replicates PCM.build_geo_feature: sin/cos encoding of voxel coords."""
    D, H, W = spatial
    ndim = 3
    assert p_enc_dim % (2 * ndim) == 0
    d_model = p_enc_dim // ndim
    div = (1e-4 ** (np.arange(0.0, d_model, 2.0) / d_model)).astype(np.float32)
    coords = np.stack(np.meshgrid(np.arange(D), np.arange(H), np.arange(W),
                                  indexing="ij"), axis=-1).astype(np.float32)
    pe = np.zeros((p_enc_dim, D, H, W), dtype=np.float32)
    for d in range(ndim):
        start = d * d_model
        for k, dv in enumerate(div):
            pe[start + 2 * k] = np.sin(coords[..., d] * dv)
            pe[start + 2 * k + 1] = np.cos(coords[..., d] * dv)
    return pe.reshape(p_enc_dim, -1).T.copy()   # (N, p_enc_dim)


def build_param_slab(geo, adj, inv_scale, params):
    """Folds every batch-invariant tensor into one (SLAB_ROWS, N) f32 slab."""
    (wth, bth, wph, bph, wgt, bgt, wgp, bgp, wg, bg, wr, br) = params
    assert 2 * F_DIM <= N and G_CH <= N and IN_CH <= _ceil8(IN_CH)

    # geometric attention bias (batch-invariant) fused with adjacency mask
    x_gt = geo @ wgt + bgt
    x_gp = geo @ wgp + bgp
    geo_scores = x_gt @ x_gp.T                                   # (N, N)
    mask = jnp.where(adj > 0.0, 0.0, NEG_INF).astype(jnp.float32)
    bias = geo_scores * inv_scale + mask                         # (N, N)
    inv_blk = jnp.broadcast_to(inv_scale, (N, N)).astype(jnp.float32)

    # fused theta/phi projection
    w_tp = jnp.concatenate([wth, wph], axis=1)                   # (IN_CH, 2F)
    b_tp = jnp.concatenate([bth, bph], axis=1)                   # (1, 2F)

    # folded G/r (r is linear, so (x@Wg+bg)@Wr+br == x@(Wg@Wr) + bg@Wr + br)
    m_fold = wg @ wr                                             # (G_CH, G_CH)
    c0 = bg @ wr                                                 # (1, G_CH)

    slab = jnp.zeros((SLAB_ROWS, N), jnp.float32)
    slab = slab.at[R_BIAS:R_BIAS + N, :].set(bias)
    slab = slab.at[R_INV:R_INV + N, :].set(inv_blk)
    slab = slab.at[R_WTP:R_WTP + IN_CH, 0:2 * F_DIM].set(w_tp)
    slab = slab.at[R_BTP:R_BTP + 1, 0:2 * F_DIM].set(b_tp)
    slab = slab.at[R_M:R_M + G_CH, 0:G_CH].set(m_fold)
    slab = slab.at[R_C0:R_C0 + 1, 0:G_CH].set(c0)
    slab = slab.at[R_BR:R_BR + 1, 0:G_CH].set(br)
    return slab


# ------------------------------ Pallas kernel --------------------------------
def pcm_kernel(f_ref, cam_ref, slab_ref, out_ref):
    # inputs arrive channel-major (lane-dense); transpose to node-major in-kernel
    f_nm = f_ref[0].T                              # (N, IN_CH)
    cam_nm = cam_ref[0].T                          # (N, G_CH)

    bias = slab_ref[R_BIAS:R_BIAS + N, :]          # (N, N)
    inv_blk = slab_ref[R_INV:R_INV + N, :]         # (N, N)
    w_tp = slab_ref[R_WTP:R_WTP + IN_CH, 0:2 * F_DIM]   # (IN_CH, 2F)
    b_tp = slab_ref[R_BTP:R_BTP + 1, 0:2 * F_DIM]        # (1, 2F)
    m_gr = slab_ref[R_M:R_M + G_CH, 0:G_CH]              # (G_CH, G_CH)
    c0 = slab_ref[R_C0:R_C0 + 1, 0:G_CH]                 # (1, G_CH)
    br = slab_ref[R_BR:R_BR + 1, 0:G_CH]                 # (1, G_CH)

    # fused theta/phi projection: one MXU dot instead of two
    x_tp = jnp.dot(f_nm, w_tp, preferred_element_type=jnp.float32) + b_tp
    x_theta = x_tp[:, :F_DIM]
    x_phi = x_tp[:, F_DIM:]

    # merge_type == 'scaled_dot_product_geo' restricted to graph neighbors;
    # geo term, 1/sqrt(deg) scaling of it, and -inf mask are pre-folded in `bias`.
    scores = jnp.dot(x_theta, x_phi.T, preferred_element_type=jnp.float32)
    scores = scores * inv_blk + bias
    scores = scores - jnp.max(scores, axis=-1, keepdims=True)
    p = jnp.exp(scores)
    inv_l = pl.reciprocal(jnp.sum(p, axis=-1, keepdims=True), approx=True)
    att = p * inv_l                                # (N, N) row-softmax

    cam_cur = cam_nm
    for _ in range(NON_LOCAL_ITER):                # static unrolled loop
        x_g = jnp.dot(cam_cur, m_gr, preferred_element_type=jnp.float32) + c0
        refined = jnp.dot(att, x_g, preferred_element_type=jnp.float32) + br
        cam_cur = refined + cam_cur if RESIDUAL else refined

    out_ref[0] = cam_cur.T                         # lane-dense (G_CH, N) store


def pcm_forward(cam, f, geo, adj, inv_scale, params):
    """cam: (B, G_CH, D, H, W), f: (B, IN_CH, D, H, W) -> refined cam, same shape."""
    Bc, Cc = cam.shape[0], cam.shape[1]
    Cf = f.shape[1]
    cam_cm = cam.reshape(Bc, Cc, N)                # (B, G_CH, N), no transpose
    f_cm = f.reshape(Bc, Cf, N)                    # (B, IN_CH, N)
    slab = build_param_slab(geo, adj, inv_scale, params)

    out_cm = pl.pallas_call(
        pcm_kernel,
        out_shape=jax.ShapeDtypeStruct((Bc, G_CH, N), jnp.float32),
        grid_spec=pltpu.PrefetchScalarGridSpec(
            num_scalar_prefetch=0,
            grid=(Bc,),
            in_specs=[
                pl.BlockSpec((1, Cf, N), lambda b: (b, 0, 0)),   # f   (per batch)
                pl.BlockSpec((1, Cc, N), lambda b: (b, 0, 0)),   # cam (per batch)
                pl.BlockSpec(slab.shape, lambda b: (0, 0)),      # packed params
            ],
            out_specs=pl.BlockSpec((1, G_CH, N), lambda b: (b, 0, 0)),
        ),
        # keep the batch grid parallel: v7x maps one batch per TensorCore; on
        # single-TC v5e/v6e the extra grid step is <1us now that all
        # batch-invariant compute/DMA is hoisted into the slab.
        compiler_params=pltpu.CompilerParams(dimension_semantics=("parallel",)),
    )(f_cm, cam_cm, slab)

    return out_cm.reshape(cam.shape)               # reshape only, no transpose


# ------------------------------ JAX reference --------------------------------
def pcm_reference(cam_flat, f_flat, geo, adj, inv_scale, params):
    """Original (un-fused) math, node-major (B, N, C) layout."""
    (wth, bth, wph, bph, wgt, bgt, wgp, bgp, wg, bg, wr, br) = params
    x_theta = f_flat @ wth + bth
    x_phi = f_flat @ wph + bph
    x_gt = geo @ wgt + bgt
    x_gp = geo @ wgp + bgp
    scores = jnp.einsum("bnf,bmf->bnm", x_theta, x_phi) + (x_gt @ x_gp.T)[None]
    scores = scores * inv_scale[None]
    scores = jnp.where(adj[None] > 0.0, scores, NEG_INF)
    att = jax.nn.softmax(scores, axis=-1)
    cam_cur = cam_flat
    for _ in range(NON_LOCAL_ITER):
        x_g = cam_cur @ wg + bg
        y = jnp.einsum("bnm,bmg->bng", att, x_g)
        refined = y @ wr + br
        cam_cur = refined + cam_cur if RESIDUAL else refined
    return cam_cur


# ---------------------------------- main -------------------------------------
if __name__ == "__main__":
    key = jax.random.PRNGKey(0)
    keys = jax.random.split(key, 16)

    # inputs (torch NCDHW convention)
    cam = jax.random.normal(keys[0], (B, G_CH) + POOL, dtype=jnp.float32)
    f = jax.random.normal(keys[1], (B, IN_CH) + POOL, dtype=jnp.float32)

    # deterministic parameters (nn.Linear weights stored transposed: (in, out))
    def lin(kw, kb, din, dout):
        w = 0.1 * jax.random.normal(kw, (din, dout), dtype=jnp.float32)
        b = 0.01 * jax.random.normal(kb, (1, dout), dtype=jnp.float32)
        return w, b

    wth, bth = lin(keys[2], keys[3], IN_CH, F_DIM)        # theta
    wph, bph = lin(keys[4], keys[5], IN_CH, F_DIM)        # phi
    wgt, bgt = lin(keys[6], keys[7], P_ENC, GEO_F_DIM)    # geo_theta
    wgp, bgp = lin(keys[8], keys[9], P_ENC, GEO_F_DIM)    # geo_phi
    wg, bg = lin(keys[10], keys[11], G_CH, G_DIM)         # G
    wr, br = lin(keys[12], keys[13], G_DIM, G_CH)         # r
    params = (wth, bth, wph, bph, wgt, bgt, wgp, bgp, wg, bg, wr, br)

    # host-side graph + positional-encoding glue
    adj_np, inv_scale_np = build_adjacency(POOL, K_SIZE, CONNECTIVITY, SELF_LOOP)
    geo_np = build_geo_feature(POOL, P_ENC)
    adj = jnp.asarray(adj_np)
    inv_scale = jnp.asarray(inv_scale_np)
    geo = jnp.asarray(geo_np)

    out = pcm_forward(cam, f, geo, adj, inv_scale, params)
    out = jax.block_until_ready(out)
    assert out.shape == cam.shape and out.dtype == jnp.float32

    # sanity check against a pure-JAX reference of the original (un-fused) math;
    # tolerance accounts for approx reciprocal + folded-weight reassociation.
    cam_flat = cam.reshape(B, G_CH, N).transpose(0, 2, 1)
    f_flat = f.reshape(B, IN_CH, N).transpose(0, 2, 1)
    ref = pcm_reference(cam_flat, f_flat, geo, adj, inv_scale, params)
    ref = ref.transpose(0, 2, 1).reshape(cam.shape)
    np.testing.assert_allclose(np.asarray(out), np.asarray(ref), rtol=1e-3, atol=1e-4)

    print("KERNEL_OK")
</pallas_src>

<mosaic_0001>
module attributes {stable_mosaic.version = 11 : i64} {
  func.func @pcm_kernel(%arg0: i32, %arg1: memref<1x8x64xf32, #tpu.memory_space<vmem>>, %arg2: memref<1x4x64xf32, #tpu.memory_space<vmem>>, %arg3: memref<168x64xf32, #tpu.memory_space<vmem>>, %arg4: memref<1x4x64xf32, #tpu.memory_space<vmem>>) attributes {dimension_semantics = [#tpu.dimension_semantics<parallel>], iteration_bounds = array<i64: 2>, scalar_prefetch = 0 : i64, scratch_operands = 0 : i64, tpu.core_type = #tpu.core_type<tc>, window_params = [{transform_indices = @transform_0, window_bounds = array<i64: 1, 8, 64>}, {transform_indices = @transform_1, window_bounds = array<i64: 1, 4, 64>}, {pipeline_mode = #tpu.pipeline_mode<synchronous>, transform_indices = @transform_2, window_bounds = array<i64: 168, 64>}, {transform_indices = @transform_3, window_bounds = array<i64: 1, 4, 64>}]} {
    %c0 = arith.constant 0 : index
    %c0_0 = arith.constant 0 : index
    %c0_1 = arith.constant 0 : index
    %0 = vector.load %arg1[%c0, %c0_0, %c0_1] : memref<1x8x64xf32, #tpu.memory_space<vmem>>, vector<1x8x64xf32>
    %1 = vector.shape_cast %0 : vector<1x8x64xf32> to vector<8x64xf32>
    %2 = tpu.transpose %1, [1, 0] : vector<8x64xf32> -> vector<64x8xf32>
    %c0_2 = arith.constant 0 : index
    %c0_3 = arith.constant 0 : index
    %c0_4 = arith.constant 0 : index
    %3 = vector.load %arg2[%c0_2, %c0_3, %c0_4] : memref<1x4x64xf32, #tpu.memory_space<vmem>>, vector<1x4x64xf32>
    %4 = vector.shape_cast %3 : vector<1x4x64xf32> to vector<4x64xf32>
    %5 = tpu.transpose %4, [1, 0] : vector<4x64xf32> -> vector<64x4xf32>
    %c0_5 = arith.constant 0 : index
    %c0_6 = arith.constant 0 : index
    %6 = vector.load %arg3[%c0_5, %c0_6] : memref<168x64xf32, #tpu.memory_space<vmem>>, vector<64x64xf32>
    %c64 = arith.constant 64 : index
    %c0_7 = arith.constant 0 : index
    %7 = vector.load %arg3[%c64, %c0_7] : memref<168x64xf32, #tpu.memory_space<vmem>>, vector<64x64xf32>
    %c128 = arith.constant 128 : index
    %c0_8 = arith.constant 0 : index
    %8 = vector.load %arg3[%c128, %c0_8] : memref<168x64xf32, #tpu.memory_space<vmem>>, vector<8x16xf32>
    %c136 = arith.constant 136 : index
    %c0_9 = arith.constant 0 : index
    %9 = vector.load %arg3[%c136, %c0_9] : memref<168x64xf32, #tpu.memory_space<vmem>>, vector<1x16xf32>
    %c144 = arith.constant 144 : index
    %c0_10 = arith.constant 0 : index
    %10 = vector.load %arg3[%c144, %c0_10] : memref<168x64xf32, #tpu.memory_space<vmem>>, vector<4x4xf32>
    %c152 = arith.constant 152 : index
    %c0_11 = arith.constant 0 : index
    %11 = vector.load %arg3[%c152, %c0_11] : memref<168x64xf32, #tpu.memory_space<vmem>>, vector<1x4xf32>
    %c160 = arith.constant 160 : index
    %c0_12 = arith.constant 0 : index
    %12 = vector.load %arg3[%c160, %c0_12] : memref<168x64xf32, #tpu.memory_space<vmem>>, vector<1x4xf32>
    %cst = arith.constant dense<0.000000e+00> : vector<64x16xf32>
    %13 = tpu.matmul %2, %8, %cst {dimension_numbers = #tpu.dot_dimension_numbers<[1], [0], [0], [1], [0, 0, 1, 1], [], []>} : vector<64x8xf32>, vector<8x16xf32>, vector<64x16xf32> -> vector<64x16xf32>
    %14 = vector.broadcast %9 : vector<1x16xf32> to vector<64x16xf32>
    %15 = arith.addf %13, %14 : vector<64x16xf32>
    %16 = vector.extract_strided_slice %15 {offsets = [0, 0], sizes = [64, 8], strides = [1, 1]} : vector<64x16xf32> to vector<64x8xf32>
    %17 = vector.extract_strided_slice %15 {offsets = [0, 8], sizes = [64, 8], strides = [1, 1]} : vector<64x16xf32> to vector<64x8xf32>
    %18 = tpu.transpose %17, [1, 0] : vector<64x8xf32> -> vector<8x64xf32>
    %cst_13 = arith.constant dense<0.000000e+00> : vector<64x64xf32>
    %19 = tpu.matmul %16, %18, %cst_13 {dimension_numbers = #tpu.dot_dimension_numbers<[1], [0], [0], [1], [0, 0, 1, 1], [], []>} : vector<64x8xf32>, vector<8x64xf32>, vector<64x64xf32> -> vector<64x64xf32>
    %20 = arith.mulf %19, %7 : vector<64x64xf32>
    %21 = arith.addf %20, %6 : vector<64x64xf32>
    %cst_14 = arith.constant dense<0xFF800000> : vector<64xf32>
    %22 = vector.multi_reduction <maximumf>, %21, %cst_14 [1] : vector<64x64xf32> to vector<64xf32>
    %23 = vector.shape_cast %22 : vector<64xf32> to vector<64x1xf32>
    %24 = vector.broadcast %23 : vector<64x1xf32> to vector<64x64xf32>
    %25 = arith.subf %21, %24 : vector<64x64xf32>
    %26 = math.exp %25 : vector<64x64xf32>
    %cst_15 = arith.constant dense<0.000000e+00> : vector<64xf32>
    %27 = vector.multi_reduction <add>, %26, %cst_15 [1] : vector<64x64xf32> to vector<64xf32>
    %28 = vector.shape_cast %27 : vector<64xf32> to vector<64x1xf32>
    %29 = tpu.reciprocal %28 {approx = true} : vector<64x1xf32> -> vector<64x1xf32>
    %30 = vector.broadcast %29 : vector<64x1xf32> to vector<64x64xf32>
    %31 = arith.mulf %26, %30 : vector<64x64xf32>
    %cst_16 = arith.constant dense<0.000000e+00> : vector<64x4xf32>
    %32 = tpu.matmul %5, %10, %cst_16 {dimension_numbers = #tpu.dot_dimension_numbers<[1], [0], [0], [1], [0, 0, 1, 1], [], []>} : vector<64x4xf32>, vector<4x4xf32>, vector<64x4xf32> -> vector<64x4xf32>
    %33 = vector.broadcast %11 : vector<1x4xf32> to vector<64x4xf32>
    %34 = arith.addf %32, %33 : vector<64x4xf32>
    %cst_17 = arith.constant dense<0.000000e+00> : vector<64x4xf32>
    %35 = tpu.matmul %31, %34, %cst_17 {dimension_numbers = #tpu.dot_dimension_numbers<[1], [0], [0], [1], [0, 0, 1, 1], [], []>} : vector<64x64xf32>, vector<64x4xf32>, vector<64x4xf32> -> vector<64x4xf32>
    %36 = vector.broadcast %12 : vector<1x4xf32> to vector<64x4xf32>
    %37 = arith.addf %35, %36 : vector<64x4xf32>
    %cst_18 = arith.constant dense<0.000000e+00> : vector<64x4xf32>
    %38 = tpu.matmul %37, %10, %cst_18 {dimension_numbers = #tpu.dot_dimension_numbers<[1], [0], [0], [1], [0, 0, 1, 1], [], []>} : vector<64x4xf32>, vector<4x4xf32>, vector<64x4xf32> -> vector<64x4xf32>
    %39 = vector.broadcast %11 : vector<1x4xf32> to vector<64x4xf32>
    %40 = arith.addf %38, %39 : vector<64x4xf32>
    %cst_19 = arith.constant dense<0.000000e+00> : vector<64x4xf32>
    %41 = tpu.matmul %31, %40, %cst_19 {dimension_numbers = #tpu.dot_dimension_numbers<[1], [0], [0], [1], [0, 0, 1, 1], [], []>} : vector<64x64xf32>, vector<64x4xf32>, vector<64x4xf32> -> vector<64x4xf32>
    %42 = vector.broadcast %12 : vector<1x4xf32> to vector<64x4xf32>
    %43 = arith.addf %41, %42 : vector<64x4xf32>
    %44 = tpu.transpose %43, [1, 0] : vector<64x4xf32> -> vector<4x64xf32>
    %c0_20 = arith.constant 0 : index
    %c0_21 = arith.constant 0 : index
    %c0_22 = arith.constant 0 : index
    %45 = vector.load %arg4[%c0_20, %c0_21, %c0_22] : memref<1x4x64xf32, #tpu.memory_space<vmem>>, vector<1x4x64xf32>
    %46 = vector.shape_cast %45 : vector<1x4x64xf32> to vector<4x64xf32>
    %47 = vector.shape_cast %44 : vector<4x64xf32> to vector<1x4x64xf32>
    tpu.vector_store %arg4[%c0_20, %c0_21, %c0_22], %47 {strides = array<i32>} : memref<1x4x64xf32, #tpu.memory_space<vmem>>, vector<1x4x64xf32>,
    return
  }
  func.func @transform_0(%arg0: i32) -> (i32, i32, i32) {
    %c0_i32 = arith.constant 0 : i32
    %c0_i32_0 = arith.constant 0 : i32
    %c0_i32_1 = arith.constant 0 : i32
    return %arg0, %c0_i32, %c0_i32_0 : i32, i32, i32
  }
  func.func @transform_1(%arg0: i32) -> (i32, i32, i32) {
    %c0_i32 = arith.constant 0 : i32
    %c0_i32_0 = arith.constant 0 : i32
    %c0_i32_1 = arith.constant 0 : i32
    return %arg0, %c0_i32, %c0_i32_0 : i32, i32, i32
  }
  func.func @transform_2(%arg0: i32) -> (i32, i32) {
    %c0_i32 = arith.constant 0 : i32
    %c0_i32_0 = arith.constant 0 : i32
    %c0_i32_1 = arith.constant 0 : i32
    return %c0_i32, %c0_i32_0 : i32, i32
  }
  func.func @transform_3(%arg0: i32) -> (i32, i32, i32) {
    %c0_i32 = arith.constant 0 : i32
    %c0_i32_0 = arith.constant 0 : i32
    %c0_i32_1 = arith.constant 0 : i32
    return %arg0, %c0_i32, %c0_i32_0 : i32, i32, i32
  }
}

</mosaic_0001>

<llo_original>
// kernel: tpu_custom_call.1
$region0: #{tpu_custom_call.1}
  #allocation0 [shape = 'u32[]', space=smem, size = 0x4, offset = 0x4, fixed_abs, tag = 'smem constant byte address 0x4 - core index']
  #allocation1 [shape = 'u32[144,128]{1,0:T(1,128)}', space=vmem, size = 0x12000, scoped, tag = 'internal scratch']
  %s0 = inlined_call_operand.vmem [shape: f32[2,8,64], index: 0, kind: input, shape index: {}]
  %s1 = inlined_call_operand.vmem [shape: f32[2,4,64], index: 1, kind: input, shape index: {}]
  %s2 = inlined_call_operand.vmem [shape: f32[168,64], index: 2, kind: input, shape index: {}]
  %s3 = inlined_call_operand.hbm [shape: f32[2,4,64], index: 3, kind: output, shape index: {}]
  %s4 = sld [smem:[#allocation0]]
  $region45: #{tpu_custom_call.1} parent=0
    _
  %s6 = ssub.s32 1, %s4
  %s7 = scalar_select 0, %s6, %s4
  $region1: #{tpu_custom_call.1} parent=0
    #allocation2 [shape = 'u8[4096]{0}', space=vmem, size = 0x1000, scoped, tag = 'output window, operand 0']
    #allocation3 [shape = 's32[2]{0}', space=sflag, size = 0x8, scoped, tag = 'scoped memory for tpu_custom_call.1']
    %8 = vsyncpa [#allocation3], 0
    %s9 = scalar_lea.sflag [#allocation3], 1
    %10 = vsyncpa %s9, 0
    loop: start=0, step=1, limit=4
    $region2: #{tpu_custom_call.1} parent=1 // loop_pre_header
      _
    $region3: #{tpu_custom_call.1} parent=1 // loop_header
      %s12 = sphi 0, %s16
      %p13 = scmp.ge.s32.totalorder %s12, 4
      %s22 = sphi 0, %s24
      %s25 = sphi 0, %s22
      %s26 = sphi 0, %s25
      %s42 = sphi 0, %s26
      %s48 = sphi 0, %s50
      %s51 = sphi 0, %s48
      %s52 = sphi 0, %s51
      %s68 = sphi 0, %s52
      %s72 = sphi 0, %s72
      %s74 = sphi 0, %s72
      %s75 = sphi 0, %s74
      %s89 = sphi 0, %s75
      %s95 = sphi 0, %s97
      %s98 = sphi 0, %s95
      %s99 = sphi 0, %s98
      %s115 = sphi 0, %s99
    $region4: #{tpu_custom_call.1} parent=1 // loop_header_branch
      %15 = sbr.rel (%p13) target = $region8
    $region5: #{tpu_custom_call.1} parent=1 // loop_body
      %s17 = ssub.s32 %s12, 1
      %s18 = ssub.s32 %s12, 2
      %s19 = sadd.s32 %s12, 1
      %s20 = ssub.s32 %s12, %s19
      %p21 = scmp.eq.s32.totalorder %s20, 0
      %s23 = sadd.s32 %s22, 1
      %s24 = scalar_select %p21, %s22, %s23
      %p27 = pneg %p21
      %p28 = scmp.eq.s32.totalorder %s12, 1
      %p29 = por %p27, %p28
      %p30 = scmp.ne.s32.totalorder %s22, %s25
      %p31 = scmp.eq.s32.totalorder %s12, 0
      %p32 = por %p30, %p31
      %p33 = scmp.ne.s32.totalorder %s22, %s25
      %p34 = scmp.eq.s32.totalorder %s17, 1
      %p35 = por %p33, %p34
      %p36 = scmp.ne.s32.totalorder %s25, %s26
      %p37 = scmp.eq.s32.totalorder %s17, 0
      %p38 = por %p36, %p37
      %p39 = scmp.ne.s32.totalorder %s25, %s26
      %p40 = scmp.eq.s32.totalorder %s18, 1
      %p41 = por %p39, %p40
      %p43 = scmp.ne.s32.totalorder %s26, %s42
      %p44 = scmp.eq.s32.totalorder %s18, 0
      %p45 = por %p43, %p44
      %s46 = ssub.s32 %s12, %s19
      %p47 = scmp.eq.s32.totalorder %s46, 0
      %s49 = sadd.s32 %s48, 1
      %s50 = scalar_select %p47, %s48, %s49
      %p53 = pneg %p47
      %p54 = scmp.eq.s32.totalorder %s12, 1
      %p55 = por %p53, %p54
      %p56 = scmp.ne.s32.totalorder %s48, %s51
      %p57 = scmp.eq.s32.totalorder %s12, 0
      %p58 = por %p56, %p57
      %p59 = scmp.ne.s32.totalorder %s48, %s51
      %p60 = scmp.eq.s32.totalorder %s17, 1
      %p61 = por %p59, %p60
      %p62 = scmp.ne.s32.totalorder %s51, %s52
      %p63 = scmp.eq.s32.totalorder %s17, 0
      %p64 = por %p62, %p63
      %p65 = scmp.ne.s32.totalorder %s51, %s52
      %p66 = scmp.eq.s32.totalorder %s18, 1
      %p67 = por %p65, %p66
      %p69 = scmp.ne.s32.totalorder %s52, %s68
      %p70 = scmp.eq.s32.totalorder %s18, 0
      %p71 = por %p69, %p70
      %s73 = sadd.s32 %s72, 1
      %p76 = scmp.eq.s32.totalorder %s12, 1
      %p77 = scmp.ne.s32.totalorder %s72, %s74
      %p78 = scmp.eq.s32.totalorder %s12, 0
      %p79 = por %p77, %p78
      %p80 = scmp.ne.s32.totalorder %s72, %s74
      %p81 = scmp.eq.s32.totalorder %s17, 1
      %p82 = por %p80, %p81
      %p83 = scmp.ne.s32.totalorder %s74, %s75
      %p84 = scmp.eq.s32.totalorder %s17, 0
      %p85 = por %p83, %p84
      %p86 = scmp.ne.s32.totalorder %s74, %s75
      %p87 = scmp.eq.s32.totalorder %s18, 1
      %p88 = por %p86, %p87
      %p90 = scmp.ne.s32.totalorder %s75, %s89
      %p91 = scmp.eq.s32.totalorder %s18, 0
      %p92 = por %p90, %p91
      %s93 = ssub.s32 %s12, %s19
      %p94 = scmp.eq.s32.totalorder %s93, 0
      %s96 = sadd.s32 %s95, 1
      %s97 = scalar_select %p94, %s95, %s96
      %p100 = pneg %p94
      %p101 = scmp.eq.s32.totalorder %s12, 1
      %p102 = por %p100, %p101
      %p103 = scmp.ne.s32.totalorder %s95, %s98
      %p104 = scmp.eq.s32.totalorder %s12, 0
      %p105 = por %p103, %p104
      %p106 = scmp.ne.s32.totalorder %s95, %s98
      %p107 = scmp.eq.s32.totalorder %s17, 1
      %p108 = por %p106, %p107
      %p109 = scmp.ne.s32.totalorder %s98, %s99
      %p110 = scmp.eq.s32.totalorder %s17, 0
      %p111 = por %p109, %p110
      %p112 = scmp.ne.s32.totalorder %s98, %s99
      %p113 = scmp.eq.s32.totalorder %s18, 1
      %p114 = por %p112, %p113
      %p116 = scmp.ne.s32.totalorder %s99, %s115
      %p117 = scmp.eq.s32.totalorder %s18, 0
      %p118 = por %p116, %p117
      %p119 = scmp.le.s32.totalorder 1, %s12
      %p120 = scmp.lt.s32.totalorder %s12, 3
      %p121 = pnand %p119, %p120
      %p122 = pneg %p121
      // Predicated region
      $region9: #{tpu_custom_call.1} parent=5 // pred_check
        _
      $region10: #{tpu_custom_call.1} parent=5 // pred_check_branch
        %124 = sbr.rel (%p121) target = $region12
      $region11: #{tpu_custom_call.1} parent=5 // pred_region
        %s125 = ssub.s32 %s12, 1
        // Predicated region
        $region13: #{tpu_custom_call.1} parent=11 // pred_check
          %p126 = pneg %p85
        $region14: #{tpu_custom_call.1} parent=11 // pred_check_branch
          %128 = sbr.rel (%p126) target = $region16
        $region15: #{tpu_custom_call.1} parent=11 // pred_region
          _
        $region16: #{tpu_custom_call.1} parent=11 // pred_fallthru
          _
      $region12: #{tpu_custom_call.1} parent=5 // pred_fallthru
        _
      %p129 = scmp.lt.s32.totalorder %s12, 2
      // Predicated region
      $region17: #{tpu_custom_call.1} parent=5 // pred_check
        %p130 = pneg %p129
      $region18: #{tpu_custom_call.1} parent=5 // pred_check_branch
        %132 = sbr.rel (%p130) target = $region20
      $region19: #{tpu_custom_call.1} parent=5 // pred_region
        // Predicated region
        $region21: #{tpu_custom_call.1} parent=19 // pred_check
          %p133 = pneg %p32
        $region22: #{tpu_custom_call.1} parent=19 // pred_check_branch
          %135 = sbr.rel (%p133) target = $region24
        $region23: #{tpu_custom_call.1} parent=19 // pred_region
          %p136 = scmp.lt.s32.totalorder %s12, 1
          %s137 = scalar_select %p136, %s12, 1
          %s138 = smul.addr %s137, 8
          %s139 = scalar_lea.vmem %s0, %s138
        $region24: #{tpu_custom_call.1} parent=19 // pred_fallthru
          _
        // Predicated region
        $region25: #{tpu_custom_call.1} parent=19 // pred_check
          %p140 = pneg %p58
        $region26: #{tpu_custom_call.1} parent=19 // pred_check_branch
          %142 = sbr.rel (%p140) target = $region28
        $region27: #{tpu_custom_call.1} parent=19 // pred_region
          %p143 = scmp.lt.s32.totalorder %s12, 1
          %s144 = scalar_select %p143, %s12, 1
          %s145 = smul.addr %s144, 4
          %s146 = scalar_lea.vmem %s1, %s145
        $region28: #{tpu_custom_call.1} parent=19 // pred_fallthru
          _
      $region20: #{tpu_custom_call.1} parent=5 // pred_fallthru
        _
      %p147 = scmp.le.s32.totalorder 1, %s12
      %p148 = scmp.lt.s32.totalorder %s12, 3
      %p149 = pnand %p147, %p148
      %p150 = pneg %p149
      // Predicated region
      $region29: #{tpu_custom_call.1} parent=5 // pred_check
        _
      $region30: #{tpu_custom_call.1} parent=5 // pred_check_branch
        %152 = sbr.rel (%p149) target = $region32
      $region31: #{tpu_custom_call.1} parent=5 // pred_region
        %s153 = ssub.s32 %s12, 1
        %p154 = scmp.lt.s32.totalorder %s17, 1
        %s155 = scalar_select %p154, %s17, 1
        %s156 = smul.addr %s155, 8
        %s157 = scalar_lea.vmem %s0, %s156
        %p158 = pneg %p38
        %p159 = pneg %p35
        %p160 = scmp.lt.s32.totalorder %s17, 1
        %s161 = scalar_select %p160, %s17, 1
        %s162 = smul.addr %s161, 4
        %s163 = scalar_lea.vmem %s1, %s162
        %p164 = pneg %p64
        %p165 = pneg %p61
        %p166 = pneg %p85
        %p167 = pneg %p82
        %p168 = pneg %p111
        %p169 = pneg %p108
        %s170 = sand.u32 %s98, 1
        %s171 = scalar_lea.sflag [#allocation3], %s170
        %s172 = sand.u32 %s98, 1
        %s173 = smul.addr %s172, 4
        %s174 = scalar_lea.vmem [#allocation2], %s173
        %p175 = scmp.lt.s32.totalorder %s17, 1
        %s176 = scalar_select %p175, %s17, 1
        %s177 = smul.addr %s176, 8
        %s178 = scalar_lea.vmem %s0, %s177
        %p179 = scmp.lt.s32.totalorder %s17, 1
        %s180 = scalar_select %p179, %s17, 1
        %s181 = smul.addr %s180, 4
        %s182 = scalar_lea.vmem %s1, %s181
        %v183 = vld [vmem:[%s178] sm:$0xff]
        %184 = vxpose.xlu0.b32.start [1/16] %v183, 128
        %185 = vxpose.xlu0.b32.cont [2/16] 0.0, 128
        %186 = vxpose.xlu0.b32.cont [3/16] 0.0, 128
        %187 = vxpose.xlu0.b32.cont [4/16] 0.0, 128
        %188 = vxpose.xlu0.b32.cont [5/16] 0.0, 128
        %189 = vxpose.xlu0.b32.cont [6/16] 0.0, 128
        %190 = vxpose.xlu0.b32.cont [7/16] 0.0, 128
        %191 = vxpose.xlu0.b32.cont [8/16] 0.0, 128
        %192 = vxpose.xlu0.b32.cont [9/16] 0.0, 128
        %193 = vxpose.xlu0.b32.cont [10/16] 0.0, 128
        %194 = vxpose.xlu0.b32.cont [11/16] 0.0, 128
        %195 = vxpose.xlu0.b32.cont [12/16] 0.0, 128
        %196 = vxpose.xlu0.b32.cont [13/16] 0.0, 128
        %197 = vxpose.xlu0.b32.cont [14/16] 0.0, 128
        %198 = vxpose.xlu0.b32.cont [15/16] 0.0, 128
        %199 = vxpose.xlu0.b32.end [16/16] 0.0, 128
        %v200 = vpop.trf.xlu0
        %v201 = vpop.trf.xlu0
        %v202 = vpop.trf.xlu0
        %v203 = vpop.trf.xlu0
        %v204 = vpop.trf.xlu0
        %v205 = vpop.trf.xlu0
        %v206 = vpop.trf.xlu0
        %v207 = vpop.trf.xlu0
        %v208 = vpop.trf.xlu0
        %v209 = vpop.trf.xlu0
        %v210 = vpop.trf.xlu0
        %v211 = vpop.trf.xlu0
        %v212 = vpop.trf.xlu0
        %v213 = vpop.trf.xlu0
        %v214 = vpop.trf.xlu0
        %v215 = vpop.trf.xlu0
        %v216 = vld [vmem:[%s182] sm:$0xf]
        %217 = vxpose.xlu0.b32.start [1/16] %v216, 128
        %218 = vxpose.xlu0.b32.cont [2/16] 0.0, 128
        %219 = vxpose.xlu0.b32.cont [3/16] 0.0, 128
        %220 = vxpose.xlu0.b32.cont [4/16] 0.0, 128
        %221 = vxpose.xlu0.b32.cont [5/16] 0.0, 128
        %222 = vxpose.xlu0.b32.cont [6/16] 0.0, 128
        %223 = vxpose.xlu0.b32.cont [7/16] 0.0, 128
        %224 = vxpose.xlu0.b32.cont [8/16] 0.0, 128
        %225 = vxpose.xlu0.b32.cont [9/16] 0.0, 128
        %226 = vxpose.xlu0.b32.cont [10/16] 0.0, 128
        %227 = vxpose.xlu0.b32.cont [11/16] 0.0, 128
        %228 = vxpose.xlu0.b32.cont [12/16] 0.0, 128
        %229 = vxpose.xlu0.b32.cont [13/16] 0.0, 128
        %230 = vxpose.xlu0.b32.cont [14/16] 0.0, 128
        %231 = vxpose.xlu0.b32.cont [15/16] 0.0, 128
        %232 = vxpose.xlu0.b32.end [16/16] 0.0, 128
        %v233 = vpop.trf.xlu0
        %v234 = vpop.trf.xlu0
        %v235 = vpop.trf.xlu0
        %v236 = vpop.trf.xlu0
        %v237 = vpop.trf.xlu0
        %v238 = vpop.trf.xlu0
        %v239 = vpop.trf.xlu0
        %v240 = vpop.trf.xlu0
        %v241 = vpop.trf.xlu0
        %v242 = vpop.trf.xlu0
        %v243 = vpop.trf.xlu0
        %v244 = vpop.trf.xlu0
        %v245 = vpop.trf.xlu0
        %v246 = vpop.trf.xlu0
        %v247 = vpop.trf.xlu0
        %v248 = vpop.trf.xlu0
        %v249 = vld [vmem:[%s2] sm:$0xff]
        %v250 = vld [vmem:[%s2 + $0x8] sm:$0xff]
        %v251 = vld [vmem:[%s2 + $0x10] sm:$0xff]
        %v252 = vld [vmem:[%s2 + $0x18] sm:$0xff]
        %v253 = vld [vmem:[%s2 + $0x20] sm:$0xff]
        %v254 = vld [vmem:[%s2 + $0x28] sm:$0xff]
        %v255 = vld [vmem:[%s2 + $0x30] sm:$0xff]
        %v256 = vld [vmem:[%s2 + $0x38] sm:$0xff]
        %v257 = vld [vmem:[%s2 + $0x40] sm:$0xff]
        %v258 = vld [vmem:[%s2 + $0x48] sm:$0xff]
        %v259 = vld [vmem:[%s2 + $0x50] sm:$0xff]
        %v260 = vld [vmem:[%s2 + $0x58] sm:$0xff]
        %v261 = vld [vmem:[%s2 + $0x60] sm:$0xff]
        %v262 = vld [vmem:[%s2 + $0x68] sm:$0xff]
        %v263 = vld [vmem:[%s2 + $0x70] sm:$0xff]
        %v264 = vld [vmem:[%s2 + $0x78] sm:$0xff]
        %v265 = vld [vmem:[%s2 + $0x80] sm:$0xff]
        %v266 = vld [vmem:[%s2 + $0x88] sm:$0x1]
        %v267 = vld [vmem:[%s2 + $0x90] sm:$0xf]
        %v268 = vld [vmem:[%s2 + $0x98] sm:$0x1]
        %v269 = vld [vmem:[%s2 + $0xa0] sm:$0x1]
        %v270 = vlaneseq
        %v271 = vshrl.u32 %v270, 7
        %v272 = vsub.s32 0, %v271
        %v273 = vrot.slane %v266, %v272
        %vm274 = vcmask 64512
        %v276 = vsel %vm274, %v200, 0
        %v279 = vsel %vm274, %v201, 0
        %v282 = vsel %vm274, %v202, 0
        %v285 = vsel %vm274, %v203, 0
        %v288 = vsel %vm274, %v204, 0
        %v291 = vsel %vm274, %v205, 0
        %v294 = vsel %vm274, %v206, 0
        %v297 = vsel %vm274, %v207, 0
        %299 = vmatprep.subr.mxu0 0.0
        %300 = vmatpush1.msra.mxu0 %v265
        %301 = vmatprep.subr.mxu0 0.0
        %302 = vmatpush1.msra.mxu0 0.0
        %303 = vmatprep.subr.mxu0 0.0
        %304 = vmatpush1.msra.mxu0 0.0
        %305 = vmatprep.subr.mxu0 0.0
        %306 = vmatpush1.msra.mxu0 0.0
        %307 = vmatprep.subr.mxu0 0.0
        %308 = vmatpush1.msra.mxu0 0.0
        %309 = vmatprep.subr.mxu0 0.0
        %310 = vmatpush1.msra.mxu0 0.0
        %311 = vmatprep.subr.mxu0 0.0
        %312 = vmatpush1.msra.mxu0 0.0
        %313 = vmatprep.subr.mxu0 0.0
        %314 = vmatpush1.msra.mxu0 0.0
        %315 = vmatprep.subr.mxu0 0.0
        %316 = vmatpush1.msra.mxu0 0.0
        %317 = vmatprep.subr.mxu0 0.0
        %318 = vmatpush1.msra.mxu0 0.0
        %319 = vmatprep.subr.mxu0 0.0
        %320 = vmatpush1.msra.mxu0 0.0
        %321 = vmatprep.subr.mxu0 0.0
        %322 = vmatpush1.msra.mxu0 0.0
        %323 = vmatprep.subr.mxu0 0.0
        %324 = vmatpush1.msra.mxu0 0.0
        %325 = vmatprep.subr.mxu0 0.0
        %326 = vmatpush1.msra.mxu0 0.0
        %327 = vmatprep.subr.mxu0 0.0
        %328 = vmatpush1.msra.mxu0 0.0
        %329 = vmatprep.subr.mxu0 0.0
        %330 = vmatpush1.msra.mxu0 0.0
        %331 = vmatprep.subr.mxu0 0.0
        %332 = vmatpush1.msra.mxu0 0.0
        %333 = vmatprep.subr.mxu0 0.0
        %334 = vmatpush1.msra.mxu0 0.0
        %335 = vmatprep.subr.mxu0 0.0
        %336 = vmatpush1.msra.mxu0 0.0
        %337 = vmatprep.subr.mxu0 0.0
        %338 = vmatpush1.msra.mxu0 0.0
        %339 = vmatprep.subr.mxu0 0.0
        %340 = vmatpush1.msra.mxu0 0.0
        %341 = vmatprep.subr.mxu0 0.0
        %342 = vmatpush1.msra.mxu0 0.0
        %343 = vmatprep.subr.mxu0 0.0
        %344 = vmatpush1.msra.mxu0 0.0
        %345 = vmatprep.subr.mxu0 0.0
        %346 = vmatpush1.msra.mxu0 0.0
        %347 = vmatprep.subr.mxu0 0.0
        %348 = vmatpush1.msra.mxu0 0.0
        %349 = vmatprep.subr.mxu0 0.0
        %350 = vmatpush1.msra.mxu0 0.0
        %351 = vmatprep.subr.mxu0 0.0
        %352 = vmatpush1.msra.mxu0 0.0
        %353 = vmatprep.subr.mxu0 0.0
        %354 = vmatpush1.msra.mxu0 0.0
        %355 = vmatprep.subr.mxu0 0.0
        %356 = vmatpush1.msra.mxu0 0.0
        %357 = vmatprep.subr.mxu0 0.0
        %358 = vmatpush1.msra.mxu0 0.0
        %359 = vmatprep.subr.mxu0 0.0
        %360 = vmatpush1.msra.mxu0 0.0
        %361 = vmatprep.subr.mxu0 0.0
        %362 = vmatpush1.msra.mxu0 0.0
        %363 = vmatprep.mubr.f32.mxu0 0.0
        %364 = vmatmul.mubr.f32.gmra.mrb[0].mxu0 %v276
        %v365 = vpop.f32.mrb[0].mxu0
        %v366 = vadd.f32 %v273, %v365
        %v367 = vpop.f32.mrb[0].mxu0
        %368 = vmatprep.mubr.f32.mxu0 0.0
        %369 = vmatmul.mubr.f32.gmra.mrb[0].mxu0 %v279
        %v370 = vpop.f32.mrb[0].mxu0
        %v371 = vadd.f32 %v273, %v370
        %v372 = vpop.f32.mrb[0].mxu0
        %373 = vmatprep.mubr.f32.mxu0 0.0
        %374 = vmatmul.mubr.f32.gmra.mrb[0].mxu0 %v282
        %v375 = vpop.f32.mrb[0].mxu0
        %v376 = vadd.f32 %v273, %v375
        %v377 = vpop.f32.mrb[0].mxu0
        %378 = vmatprep.mubr.f32.mxu0 0.0
        %379 = vmatmul.mubr.f32.gmra.mrb[0].mxu0 %v285
        %v380 = vpop.f32.mrb[0].mxu0
        %v381 = vadd.f32 %v273, %v380
        %v382 = vpop.f32.mrb[0].mxu0
        %383 = vmatprep.mubr.f32.mxu0 0.0
        %384 = vmatmul.mubr.f32.gmra.mrb[0].mxu0 %v288
        %v385 = vpop.f32.mrb[0].mxu0
        %v386 = vadd.f32 %v273, %v385
        %v387 = vpop.f32.mrb[0].mxu0
        %388 = vmatprep.mubr.f32.mxu0 0.0
        %389 = vmatmul.mubr.f32.gmra.mrb[0].mxu0 %v291
        %v390 = vpop.f32.mrb[0].mxu0
        %v391 = vadd.f32 %v273, %v390
        %v392 = vpop.f32.mrb[0].mxu0
        %393 = vmatprep.mubr.f32.mxu0 0.0
        %394 = vmatmul.mubr.f32.gmra.mrb[0].mxu0 %v294
        %v395 = vpop.f32.mrb[0].mxu0
        %v396 = vadd.f32 %v273, %v395
        %v397 = vpop.f32.mrb[0].mxu0
        %398 = vmatprep.mubr.f32.mxu0 0.0
        %399 = vmatmul.mubr.f32.gmra.mrb[0].mxu0 %v297
        %v400 = vpop.f32.mrb[0].mxu0
        %v401 = vadd.f32 %v273, %v400
        %v402 = vpop.f32.mrb[0].mxu0
        %403 = vdwg.mxu0
        %412 = vrot.lane.b32.xlu0 %v366, 120
        %v413 = vpop.permute.xlu0 %412
        %414 = vrot.lane.b32.xlu0 %v371, 120
        %v415 = vpop.permute.xlu0 %414
        %416 = vrot.lane.b32.xlu0 %v376, 120
        %v417 = vpop.permute.xlu0 %416
        %418 = vrot.lane.b32.xlu0 %v381, 120
        %v419 = vpop.permute.xlu0 %418
        %420 = vrot.lane.b32.xlu0 %v386, 120
        %v421 = vpop.permute.xlu0 %420
        %422 = vrot.lane.b32.xlu0 %v391, 120
        %v423 = vpop.permute.xlu0 %422
        %424 = vrot.lane.b32.xlu0 %v396, 120
        %v425 = vpop.permute.xlu0 %424
        %426 = vrot.lane.b32.xlu0 %v401, 120
        %v427 = vpop.permute.xlu0 %426
        %v428 = vsel %vm274, %v366, 0
        %v430 = vsel %vm274, %v371, 0
        %v432 = vsel %vm274, %v376, 0
        %v434 = vsel %vm274, %v381, 0
        %v436 = vsel %vm274, %v386, 0
        %v438 = vsel %vm274, %v391, 0
        %v440 = vsel %vm274, %v396, 0
        %v442 = vsel %vm274, %v401, 0
        %v444 = vsel %vm274, %v413, 0
        %v446 = vsel %vm274, %v415, 0
        %v448 = vsel %vm274, %v417, 0
        %v450 = vsel %vm274, %v419, 0
        %v452 = vsel %vm274, %v421, 0
        %v454 = vsel %vm274, %v423, 0
        %v456 = vsel %vm274, %v425, 0
        %v458 = vsel %vm274, %v427, 0
        %460 = vmatprep.subr.mxu0 0.0
        %461 = vmatpush1.xpose.msra.mxu0 %v444
        %462 = vmatprep.subr.mxu0 0.0
        %463 = vmatpush1.xpose.msra.mxu0 %v446
        %464 = vmatprep.subr.mxu0 0.0
        %465 = vmatpush1.xpose.msra.mxu0 %v448
        %466 = vmatprep.subr.mxu0 0.0
        %467 = vmatpush1.xpose.msra.mxu0 %v450
        %468 = vmatprep.subr.mxu0 0.0
        %469 = vmatpush1.xpose.msra.mxu0 %v452
        %470 = vmatprep.subr.mxu0 0.0
        %471 = vmatpush1.xpose.msra.mxu0 %v454
        %472 = vmatprep.subr.mxu0 0.0
        %473 = vmatpush1.xpose.msra.mxu0 %v456
        %474 = vmatprep.subr.mxu0 0.0
        %475 = vmatpush1.xpose.msra.mxu0 %v458
        %476 = vmatprep.subr.mxu0 0.0
        %477 = vmatpush1.xpose.msra.mxu0 0.0
        %478 = vmatprep.subr.mxu0 0.0
        %479 = vmatpush1.xpose.msra.mxu0 0.0
        %480 = vmatprep.subr.mxu0 0.0
        %481 = vmatpush1.xpose.msra.mxu0 0.0
        %482 = vmatprep.subr.mxu0 0.0
        %483 = vmatpush1.xpose.msra.mxu0 0.0
        %484 = vmatprep.subr.mxu0 0.0
        %485 = vmatpush1.xpose.msra.mxu0 0.0
        %486 = vmatprep.subr.mxu0 0.0
        %487 = vmatpush1.xpose.msra.mxu0 0.0
        %488 = vmatprep.subr.mxu0 0.0
        %489 = vmatpush1.xpose.msra.mxu0 0.0
        %490 = vmatprep.subr.mxu0 0.0
        %491 = vmatpush1.xpose.msra.mxu0 0.0
        %492 = vmatprep.subr.mxu0 0.0
        %493 = vmatpush1.xpose.msra.mxu0 0.0
        %494 = vmatprep.subr.mxu0 0.0
        %495 = vmatpush1.xpose.msra.mxu0 0.0
        %496 = vmatprep.subr.mxu0 0.0
        %497 = vmatpush1.xpose.msra.mxu0 0.0
        %498 = vmatprep.subr.mxu0 0.0
        %499 = vmatpush1.xpose.msra.mxu0 0.0
        %500 = vmatprep.subr.mxu0 0.0
        %501 = vmatpush1.xpose.msra.mxu0 0.0
        %502 = vmatprep.subr.mxu0 0.0
        %503 = vmatpush1.xpose.msra.mxu0 0.0
        %504 = vmatprep.subr.mxu0 0.0
        %505 = vmatpush1.xpose.msra.mxu0 0.0
        %506 = vmatprep.subr.mxu0 0.0
        %507 = vmatpush1.xpose.msra.mxu0 0.0
        %508 = vmatprep.subr.mxu0 0.0
        %509 = vmatpush1.xpose.msra.mxu0 0.0
        %510 = vmatprep.subr.mxu0 0.0
        %511 = vmatpush1.xpose.msra.mxu0 0.0
        %512 = vmatprep.subr.mxu0 0.0
        %513 = vmatpush1.xpose.msra.mxu0 0.0
        %514 = vmatprep.subr.mxu0 0.0
        %515 = vmatpush1.xpose.msra.mxu0 0.0
        %516 = vmatprep.subr.mxu0 0.0
        %517 = vmatpush1.xpose.msra.mxu0 0.0
        %518 = vmatprep.subr.mxu0 0.0
        %519 = vmatpush1.xpose.msra.mxu0 0.0
        %520 = vmatprep.subr.mxu0 0.0
        %521 = vmatpush1.xpose.msra.mxu0 0.0
        %522 = vmatprep.subr.mxu0 0.0
        %523 = vmatpush1.xpose.msra.mxu0 0.0
        %524 = vmatprep.mubr.f32.mxu0 0.0
        %525 = vmatmul.mubr.f32.gmra.mrb[0].mxu0 %v428
        %v526 = vpop.f32.mrb[0].mxu0
        %v527 = vadd.f32 0.0, %v526
        %v528 = vpop.f32.mrb[0].mxu0
        %529 = vmatprep.mubr.f32.mxu0 0.0
        %530 = vmatmul.mubr.f32.gmra.mrb[0].mxu0 %v430
        %v531 = vpop.f32.mrb[0].mxu0
        %v532 = vadd.f32 0.0, %v531
        %v533 = vpop.f32.mrb[0].mxu0
        %534 = vmatprep.mubr.f32.mxu0 0.0
        %535 = vmatmul.mubr.f32.gmra.mrb[0].mxu0 %v432
        %v536 = vpop.f32.mrb[0].mxu0
        %v537 = vadd.f32 0.0, %v536
        %v538 = vpop.f32.mrb[0].mxu0
        %539 = vmatprep.mubr.f32.mxu0 0.0
        %540 = vmatmul.mubr.f32.gmra.mrb[0].mxu0 %v434
        %v541 = vpop.f32.mrb[0].mxu0
        %v542 = vadd.f32 0.0, %v541
        %v543 = vpop.f32.mrb[0].mxu0
        %544 = vmatprep.mubr.f32.mxu0 0.0
        %545 = vmatmul.mubr.f32.gmra.mrb[0].mxu0 %v436
        %v546 = vpop.f32.mrb[0].mxu0
        %v547 = vadd.f32 0.0, %v546
        %v548 = vpop.f32.mrb[0].mxu0
        %549 = vmatprep.mubr.f32.mxu0 0.0
        %550 = vmatmul.mubr.f32.gmra.mrb[0].mxu0 %v438
        %v551 = vpop.f32.mrb[0].mxu0
        %v552 = vadd.f32 0.0, %v551
        %v553 = vpop.f32.mrb[0].mxu0
        %554 = vmatprep.mubr.f32.mxu0 0.0
        %555 = vmatmul.mubr.f32.gmra.mrb[0].mxu0 %v440
        %v556 = vpop.f32.mrb[0].mxu0
        %v557 = vadd.f32 0.0, %v556
        %v558 = vpop.f32.mrb[0].mxu0
        %559 = vmatprep.mubr.f32.mxu0 0.0
        %560 = vmatmul.mubr.f32.gmra.mrb[0].mxu0 %v442
        %v561 = vpop.f32.mrb[0].mxu0
        %v562 = vadd.f32 0.0, %v561
        %v563 = vpop.f32.mrb[0].mxu0
        %564 = vdwg.mxu0
        %v565 = vmul.f32 %v527, %v257
        %v566 = vmul.f32 %v532, %v258
        %v567 = vmul.f32 %v537, %v259
        %v568 = vmul.f32 %v542, %v260
        %v569 = vmul.f32 %v547, %v261
        %v570 = vmul.f32 %v552, %v262
        %v571 = vmul.f32 %v557, %v263
        %v572 = vmul.f32 %v562, %v264
        %v573 = vadd.f32 %v565, %v249
        %v574 = vadd.f32 %v566, %v250
        %v575 = vadd.f32 %v567, %v251
        %v576 = vadd.f32 %v568, %v252
        %v577 = vadd.f32 %v569, %v253
        %v578 = vadd.f32 %v570, %v254
        %v579 = vadd.f32 %v571, %v255
        %v580 = vadd.f32 %v572, %v256
        %vm581 = vcmask 523264
        %v582 = vsel %vm581, %v573, -inf
        %583 = vmax.xlane.f32.xlu0 %v582
        %v584 = vpop.xlane.xlu0 %583
        %v585 = vsel %vm581, %v574, -inf
        %586 = vmax.xlane.f32.xlu0 %v585
        %v587 = vpop.xlane.xlu0 %586
        %v588 = vsel %vm581, %v575, -inf
        %589 = vmax.xlane.f32.xlu0 %v588
        %v590 = vpop.xlane.xlu0 %589
        %v591 = vsel %vm581, %v576, -inf
        %592 = vmax.xlane.f32.xlu0 %v591
        %v593 = vpop.xlane.xlu0 %592
        %v594 = vsel %vm581, %v577, -inf
        %595 = vmax.xlane.f32.xlu0 %v594
        %v596 = vpop.xlane.xlu0 %595
        %v597 = vsel %vm581, %v578, -inf
        %598 = vmax.xlane.f32.xlu0 %v597
        %v599 = vpop.xlane.xlu0 %598
        %v600 = vsel %vm581, %v579, -inf
        %601 = vmax.xlane.f32.xlu0 %v600
        %v602 = vpop.xlane.xlu0 %601
        %v603 = vsel %vm581, %v580, -inf
        %604 = vmax.xlane.f32.xlu0 %v603
        %v605 = vpop.xlane.xlu0 %604
        %v606 = vsub.f32 %v573, %v584
        %v607 = vsub.f32 %v574, %v587
        %v608 = vsub.f32 %v575, %v590
        %v609 = vsub.f32 %v576, %v593
        %v610 = vsub.f32 %v577, %v596
        %v611 = vsub.f32 %v578, %v599
        %v612 = vsub.f32 %v579, %v602
        %v613 = vsub.f32 %v580, %v605
        %v614 = vmul.f32 %v606, 1.442695
        %v615 = vpow.pop %v614
        %v616 = vmul.f32 %v607, 1.442695
        %v617 = vpow.pop %v616
        %v618 = vmul.f32 %v608, 1.442695
        %v619 = vpow.pop %v618
        %v620 = vmul.f32 %v609, 1.442695
        %v621 = vpow.pop %v620
        %v622 = vmul.f32 %v610, 1.442695
        %v623 = vpow.pop %v622
        %v624 = vmul.f32 %v611, 1.442695
        %v625 = vpow.pop %v624
        %v626 = vmul.f32 %v612, 1.442695
        %v627 = vpow.pop %v626
        %v628 = vmul.f32 %v613, 1.442695
        %v629 = vpow.pop %v628
        %v630 = vsel %vm581, %v615, 0.0
        %631 = vadd.xlane.f32.xlu0 %v630
        %v632 = vpop.xlane.xlu0 %631
        %v633 = vsel %vm581, %v617, 0.0
        %634 = vadd.xlane.f32.xlu0 %v633
        %v635 = vpop.xlane.xlu0 %634
        %v636 = vsel %vm581, %v619, 0.0
        %637 = vadd.xlane.f32.xlu0 %v636
        %v638 = vpop.xlane.xlu0 %637
        %v639 = vsel %vm581, %v621, 0.0
        %640 = vadd.xlane.f32.xlu0 %v639
        %v641 = vpop.xlane.xlu0 %640
        %v642 = vsel %vm581, %v623, 0.0
        %643 = vadd.xlane.f32.xlu0 %v642
        %v644 = vpop.xlane.xlu0 %643
        %v645 = vsel %vm581, %v625, 0.0
        %646 = vadd.xlane.f32.xlu0 %v645
        %v647 = vpop.xlane.xlu0 %646
        %v648 = vsel %vm581, %v627, 0.0
        %649 = vadd.xlane.f32.xlu0 %v648
        %v650 = vpop.xlane.xlu0 %649
        %v651 = vsel %vm581, %v629, 0.0
        %652 = vadd.xlane.f32.xlu0 %v651
        %v653 = vpop.xlane.xlu0 %652
        %v654 = vrcp.pop %v632
        %v655 = vrcp.pop %v635
        %v656 = vrcp.pop %v638
        %v657 = vrcp.pop %v641
        %v658 = vrcp.pop %v644
        %v659 = vrcp.pop %v647
        %v660 = vrcp.pop %v650
        %v661 = vrcp.pop %v653
        %v662 = vmul.f32 %v615, %v654
        %v663 = vmul.f32 %v617, %v655
        %v664 = vmul.f32 %v619, %v656
        %v665 = vmul.f32 %v621, %v657
        %v666 = vmul.f32 %v623, %v658
        %v667 = vmul.f32 %v625, %v659
        %v668 = vmul.f32 %v627, %v660
        %v669 = vmul.f32 %v629, %v661
        %v670 = vlaneseq
        %v671 = vshrl.u32 %v670, 7
        %v672 = vsub.s32 0, %v671
        %v673 = vrot.slane %v268, %v672
        %vm674 = vcmask 31744
        %v676 = vsel %vm674, %v233, 0
        %v679 = vsel %vm674, %v234, 0
        %v682 = vsel %vm674, %v235, 0
        %v685 = vsel %vm674, %v236, 0
        %v688 = vsel %vm674, %v237, 0
        %v691 = vsel %vm674, %v238, 0
        %v694 = vsel %vm674, %v239, 0
        %v697 = vsel %vm674, %v240, 0
        %vm699 = vcmask 1043456
        %v701 = vsel %vm699, %v267, 0
        %703 = vmatprep.subr.mxu0 0.0
        %704 = vmatpush1.msra.mxu0 %v701
        %705 = vmatprep.subr.mxu0 0.0
        %706 = vmatpush1.msra.mxu0 0.0
        %707 = vmatprep.subr.mxu0 0.0
        %708 = vmatpush1.msra.mxu0 0.0
        %709 = vmatprep.subr.mxu0 0.0
        %710 = vmatpush1.msra.mxu0 0.0
        %711 = vmatprep.subr.mxu0 0.0
        %712 = vmatpush1.msra.mxu0 0.0
        %713 = vmatprep.subr.mxu0 0.0
        %714 = vmatpush1.msra.mxu0 0.0
        %715 = vmatprep.subr.mxu0 0.0
        %716 = vmatpush1.msra.mxu0 0.0
        %717 = vmatprep.subr.mxu0 0.0
        %718 = vmatpush1.msra.mxu0 0.0
        %719 = vmatprep.subr.mxu0 0.0
        %720 = vmatpush1.msra.mxu0 0.0
        %721 = vmatprep.subr.mxu0 0.0
        %722 = vmatpush1.msra.mxu0 0.0
        %723 = vmatprep.subr.mxu0 0.0
        %724 = vmatpush1.msra.mxu0 0.0
        %725 = vmatprep.subr.mxu0 0.0
        %726 = vmatpush1.msra.mxu0 0.0
        %727 = vmatprep.subr.mxu0 0.0
        %728 = vmatpush1.msra.mxu0 0.0
        %729 = vmatprep.subr.mxu0 0.0
        %730 = vmatpush1.msra.mxu0 0.0
        %731 = vmatprep.subr.mxu0 0.0
        %732 = vmatpush1.msra.mxu0 0.0
        %733 = vmatprep.subr.mxu0 0.0
        %734 = vmatpush1.msra.mxu0 0.0
        %735 = vmatprep.subr.mxu0 0.0
        %736 = vmatpush1.msra.mxu0 0.0
        %737 = vmatprep.subr.mxu0 0.0
        %738 = vmatpush1.msra.mxu0 0.0
        %739 = vmatprep.subr.mxu0 0.0
        %740 = vmatpush1.msra.mxu0 0.0
        %741 = vmatprep.subr.mxu0 0.0
        %742 = vmatpush1.msra.mxu0 0.0
        %743 = vmatprep.subr.mxu0 0.0
        %744 = vmatpush1.msra.mxu0 0.0
        %745 = vmatprep.subr.mxu0 0.0
        %746 = vmatpush1.msra.mxu0 0.0
        %747 = vmatprep.subr.mxu0 0.0
        %748 = vmatpush1.msra.mxu0 0.0
        %749 = vmatprep.subr.mxu0 0.0
        %750 = vmatpush1.msra.mxu0 0.0
        %751 = vmatprep.subr.mxu0 0.0
        %752 = vmatpush1.msra.mxu0 0.0
        %753 = vmatprep.subr.mxu0 0.0
        %754 = vmatpush1.msra.mxu0 0.0
        %755 = vmatprep.subr.mxu0 0.0
        %756 = vmatpush1.msra.mxu0 0.0
        %757 = vmatprep.subr.mxu0 0.0
        %758 = vmatpush1.msra.mxu0 0.0
        %759 = vmatprep.subr.mxu0 0.0
        %760 = vmatpush1.msra.mxu0 0.0
        %761 = vmatprep.subr.mxu0 0.0
        %762 = vmatpush1.msra.mxu0 0.0
        %763 = vmatprep.subr.mxu0 0.0
        %764 = vmatpush1.msra.mxu0 0.0
        %765 = vmatprep.subr.mxu0 0.0
        %766 = vmatpush1.msra.mxu0 0.0
        %767 = vmatprep.mubr.f32.mxu0 0.0
        %768 = vmatmul.mubr.f32.gmra.mrb[0].mxu0 %v676
        %v769 = vpop.f32.mrb[0].mxu0
        %v770 = vadd.f32 %v673, %v769
        %v771 = vpop.f32.mrb[0].mxu0
        %772 = vmatprep.mubr.f32.mxu0 0.0
        %773 = vmatmul.mubr.f32.gmra.mrb[0].mxu0 %v679
        %v774 = vpop.f32.mrb[0].mxu0
        %v775 = vadd.f32 %v673, %v774
        %v776 = vpop.f32.mrb[0].mxu0
        %777 = vmatprep.mubr.f32.mxu0 0.0
        %778 = vmatmul.mubr.f32.gmra.mrb[0].mxu0 %v682
        %v779 = vpop.f32.mrb[0].mxu0
        %v780 = vadd.f32 %v673, %v779
        %v781 = vpop.f32.mrb[0].mxu0
        %782 = vmatprep.mubr.f32.mxu0 0.0
        %783 = vmatmul.mubr.f32.gmra.mrb[0].mxu0 %v685
        %v784 = vpop.f32.mrb[0].mxu0
        %v785 = vadd.f32 %v673, %v784
        %v786 = vpop.f32.mrb[0].mxu0
        %787 = vmatprep.mubr.f32.mxu0 0.0
        %788 = vmatmul.mubr.f32.gmra.mrb[0].mxu0 %v688
        %v789 = vpop.f32.mrb[0].mxu0
        %v790 = vadd.f32 %v673, %v789
        %v791 = vpop.f32.mrb[0].mxu0
        %792 = vmatprep.mubr.f32.mxu0 0.0
        %793 = vmatmul.mubr.f32.gmra.mrb[0].mxu0 %v691
        %v794 = vpop.f32.mrb[0].mxu0
        %v795 = vadd.f32 %v673, %v794
        %v796 = vpop.f32.mrb[0].mxu0
        %797 = vmatprep.mubr.f32.mxu0 0.0
        %798 = vmatmul.mubr.f32.gmra.mrb[0].mxu0 %v694
        %v799 = vpop.f32.mrb[0].mxu0
        %v800 = vadd.f32 %v673, %v799
        %v801 = vpop.f32.mrb[0].mxu0
        %802 = vmatprep.mubr.f32.mxu0 0.0
        %803 = vmatmul.mubr.f32.gmra.mrb[0].mxu0 %v697
        %v804 = vpop.f32.mrb[0].mxu0
        %v805 = vadd.f32 %v673, %v804
        %v806 = vpop.f32.mrb[0].mxu0
        %807 = vdwg.mxu0
        %v808 = vlaneseq
        %v809 = vshrl.u32 %v808, 7
        %v810 = vsub.s32 0, %v809
        %v811 = vrot.slane %v269, %v810
        %v813 = vsel %vm581, %v662, 0
        %v816 = vsel %vm581, %v663, 0
        %v819 = vsel %vm581, %v664, 0
        %v822 = vsel %vm581, %v665, 0
        %v825 = vsel %vm581, %v666, 0
        %v828 = vsel %vm581, %v667, 0
        %v831 = vsel %vm581, %v668, 0
        %v834 = vsel %vm581, %v669, 0
        %836 = vmatprep.subr.mxu0 0.0
        %837 = vmatpush1.msra.mxu0 %v770
        %838 = vmatprep.subr.mxu0 0.0
        %839 = vmatpush1.msra.mxu0 %v775
        %840 = vmatprep.subr.mxu0 0.0
        %841 = vmatpush1.msra.mxu0 %v780
        %842 = vmatprep.subr.mxu0 0.0
        %843 = vmatpush1.msra.mxu0 %v785
        %844 = vmatprep.subr.mxu0 0.0
        %845 = vmatpush1.msra.mxu0 %v790
        %846 = vmatprep.subr.mxu0 0.0
        %847 = vmatpush1.msra.mxu0 %v795
        %848 = vmatprep.subr.mxu0 0.0
        %849 = vmatpush1.msra.mxu0 %v800
        %850 = vmatprep.subr.mxu0 0.0
        %851 = vmatpush1.msra.mxu0 %v805
        %852 = vmatprep.subr.mxu0 0.0
        %853 = vmatpush1.msra.mxu0 0.0
        %854 = vmatprep.subr.mxu0 0.0
        %855 = vmatpush1.msra.mxu0 0.0
        %856 = vmatprep.subr.mxu0 0.0
        %857 = vmatpush1.msra.mxu0 0.0
        %858 = vmatprep.subr.mxu0 0.0
        %859 = vmatpush1.msra.mxu0 0.0
        %860 = vmatprep.subr.mxu0 0.0
        %861 = vmatpush1.msra.mxu0 0.0
        %862 = vmatprep.subr.mxu0 0.0
        %863 = vmatpush1.msra.mxu0 0.0
        %864 = vmatprep.subr.mxu0 0.0
        %865 = vmatpush1.msra.mxu0 0.0
        %866 = vmatprep.subr.mxu0 0.0
        %867 = vmatpush1.msra.mxu0 0.0
        %868 = vmatprep.subr.mxu0 0.0
        %869 = vmatpush1.msra.mxu0 0.0
        %870 = vmatprep.subr.mxu0 0.0
        %871 = vmatpush1.msra.mxu0 0.0
        %872 = vmatprep.subr.mxu0 0.0
        %873 = vmatpush1.msra.mxu0 0.0
        %874 = vmatprep.subr.mxu0 0.0
        %875 = vmatpush1.msra.mxu0 0.0
        %876 = vmatprep.subr.mxu0 0.0
        %877 = vmatpush1.msra.mxu0 0.0
        %878 = vmatprep.subr.mxu0 0.0
        %879 = vmatpush1.msra.mxu0 0.0
        %880 = vmatprep.subr.mxu0 0.0
        %881 = vmatpush1.msra.mxu0 0.0
        %882 = vmatprep.subr.mxu0 0.0
        %883 = vmatpush1.msra.mxu0 0.0
        %884 = vmatprep.subr.mxu0 0.0
        %885 = vmatpush1.msra.mxu0 0.0
        %886 = vmatprep.subr.mxu0 0.0
        %887 = vmatpush1.msra.mxu0 0.0
        %888 = vmatprep.subr.mxu0 0.0
        %889 = vmatpush1.msra.mxu0 0.0
        %890 = vmatprep.subr.mxu0 0.0
        %891 = vmatpush1.msra.mxu0 0.0
        %892 = vmatprep.subr.mxu0 0.0
        %893 = vmatpush1.msra.mxu0 0.0
        %894 = vmatprep.subr.mxu0 0.0
        %895 = vmatpush1.msra.mxu0 0.0
        %896 = vmatprep.subr.mxu0 0.0
        %897 = vmatpush1.msra.mxu0 0.0
        %898 = vmatprep.subr.mxu0 0.0
        %899 = vmatpush1.msra.mxu0 0.0
        %900 = vmatprep.mubr.f32.mxu0 0.0
        %901 = vmatmul.mubr.f32.gmra.mrb[0].mxu0 %v813
        %v902 = vpop.f32.mrb[0].mxu0
        %v903 = vadd.f32 %v811, %v902
        %v904 = vpop.f32.mrb[0].mxu0
        %905 = vmatprep.mubr.f32.mxu0 0.0
        %906 = vmatmul.mubr.f32.gmra.mrb[0].mxu0 %v816
        %v907 = vpop.f32.mrb[0].mxu0
        %v908 = vadd.f32 %v811, %v907
        %v909 = vpop.f32.mrb[0].mxu0
        %910 = vmatprep.mubr.f32.mxu0 0.0
        %911 = vmatmul.mubr.f32.gmra.mrb[0].mxu0 %v819
        %v912 = vpop.f32.mrb[0].mxu0
        %v913 = vadd.f32 %v811, %v912
        %v914 = vpop.f32.mrb[0].mxu0
        %915 = vmatprep.mubr.f32.mxu0 0.0
        %916 = vmatmul.mubr.f32.gmra.mrb[0].mxu0 %v822
        %v917 = vpop.f32.mrb[0].mxu0
        %v918 = vadd.f32 %v811, %v917
        %v919 = vpop.f32.mrb[0].mxu0
        %920 = vmatprep.mubr.f32.mxu0 0.0
        %921 = vmatmul.mubr.f32.gmra.mrb[0].mxu0 %v825
        %v922 = vpop.f32.mrb[0].mxu0
        %v923 = vadd.f32 %v811, %v922
        %v924 = vpop.f32.mrb[0].mxu0
        %925 = vmatprep.mubr.f32.mxu0 0.0
        %926 = vmatmul.mubr.f32.gmra.mrb[0].mxu0 %v828
        %v927 = vpop.f32.mrb[0].mxu0
        %v928 = vadd.f32 %v811, %v927
        %v929 = vpop.f32.mrb[0].mxu0
        %930 = vmatprep.mubr.f32.mxu0 0.0
        %931 = vmatmul.mubr.f32.gmra.mrb[0].mxu0 %v831
        %v932 = vpop.f32.mrb[0].mxu0
        %v933 = vadd.f32 %v811, %v932
        %v934 = vpop.f32.mrb[0].mxu0
        %935 = vmatprep.mubr.f32.mxu0 0.0
        %936 = vmatmul.mubr.f32.gmra.mrb[0].mxu0 %v834
        %v937 = vpop.f32.mrb[0].mxu0
        %v938 = vadd.f32 %v811, %v937
        %v939 = vpop.f32.mrb[0].mxu0
        %940 = vdwg.mxu0
        %v942 = vsel %vm674, %v903, 0
        %v945 = vsel %vm674, %v908, 0
        %v948 = vsel %vm674, %v913, 0
        %v951 = vsel %vm674, %v918, 0
        %v954 = vsel %vm674, %v923, 0
        %v957 = vsel %vm674, %v928, 0
        %v960 = vsel %vm674, %v933, 0
        %v963 = vsel %vm674, %v938, 0
        %965 = vmatprep.subr.mxu0 0.0
        %966 = vmatpush1.msra.mxu0 %v701
        %967 = vmatprep.subr.mxu0 0.0
        %968 = vmatpush1.msra.mxu0 0.0
        %969 = vmatprep.subr.mxu0 0.0
        %970 = vmatpush1.msra.mxu0 0.0
        %971 = vmatprep.subr.mxu0 0.0
        %972 = vmatpush1.msra.mxu0 0.0
        %973 = vmatprep.subr.mxu0 0.0
        %974 = vmatpush1.msra.mxu0 0.0
        %975 = vmatprep.subr.mxu0 0.0
        %976 = vmatpush1.msra.mxu0 0.0
        %977 = vmatprep.subr.mxu0 0.0
        %978 = vmatpush1.msra.mxu0 0.0
        %979 = vmatprep.subr.mxu0 0.0
        %980 = vmatpush1.msra.mxu0 0.0
        %981 = vmatprep.subr.mxu0 0.0
        %982 = vmatpush1.msra.mxu0 0.0
        %983 = vmatprep.subr.mxu0 0.0
        %984 = vmatpush1.msra.mxu0 0.0
        %985 = vmatprep.subr.mxu0 0.0
        %986 = vmatpush1.msra.mxu0 0.0
        %987 = vmatprep.subr.mxu0 0.0
        %988 = vmatpush1.msra.mxu0 0.0
        %989 = vmatprep.subr.mxu0 0.0
        %990 = vmatpush1.msra.mxu0 0.0
        %991 = vmatprep.subr.mxu0 0.0
        %992 = vmatpush1.msra.mxu0 0.0
        %993 = vmatprep.subr.mxu0 0.0
        %994 = vmatpush1.msra.mxu0 0.0
        %995 = vmatprep.subr.mxu0 0.0
        %996 = vmatpush1.msra.mxu0 0.0
        %997 = vmatprep.subr.mxu0 0.0
        %998 = vmatpush1.msra.mxu0 0.0
        %999 = vmatprep.subr.mxu0 0.0
        %1000 = vmatpush1.msra.mxu0 0.0
        %1001 = vmatprep.subr.mxu0 0.0
        %1002 = vmatpush1.msra.mxu0 0.0
        %1003 = vmatprep.subr.mxu0 0.0
        %1004 = vmatpush1.msra.mxu0 0.0
        %1005 = vmatprep.subr.mxu0 0.0
        %1006 = vmatpush1.msra.mxu0 0.0
        %1007 = vmatprep.subr.mxu0 0.0
        %1008 = vmatpush1.msra.mxu0 0.0
        %1009 = vmatprep.subr.mxu0 0.0
        %1010 = vmatpush1.msra.mxu0 0.0
        %1011 = vmatprep.subr.mxu0 0.0
        %1012 = vmatpush1.msra.mxu0 0.0
        %1013 = vmatprep.subr.mxu0 0.0
        %1014 = vmatpush1.msra.mxu0 0.0
        %1015 = vmatprep.subr.mxu0 0.0
        %1016 = vmatpush1.msra.mxu0 0.0
        %1017 = vmatprep.subr.mxu0 0.0
        %1018 = vmatpush1.msra.mxu0 0.0
        %1019 = vmatprep.subr.mxu0 0.0
        %1020 = vmatpush1.msra.mxu0 0.0
        %1021 = vmatprep.subr.mxu0 0.0
        %1022 = vmatpush1.msra.mxu0 0.0
        %1023 = vmatprep.subr.mxu0 0.0
        %1024 = vmatpush1.msra.mxu0 0.0
        %1025 = vmatprep.subr.mxu0 0.0
        %1026 = vmatpush1.msra.mxu0 0.0
        %1027 = vmatprep.subr.mxu0 0.0
        %1028 = vmatpush1.msra.mxu0 0.0
        %1029 = vmatprep.mubr.f32.mxu0 0.0
        %1030 = vmatmul.mubr.f32.gmra.mrb[0].mxu0 %v942
        %v1031 = vpop.f32.mrb[0].mxu0
        %v1032 = vadd.f32 %v673, %v1031
        %v1033 = vpop.f32.mrb[0].mxu0
        %1034 = vmatprep.mubr.f32.mxu0 0.0
        %1035 = vmatmul.mubr.f32.gmra.mrb[0].mxu0 %v945
        %v1036 = vpop.f32.mrb[0].mxu0
        %v1037 = vadd.f32 %v673, %v1036
        %v1038 = vpop.f32.mrb[0].mxu0
        %1039 = vmatprep.mubr.f32.mxu0 0.0
        %1040 = vmatmul.mubr.f32.gmra.mrb[0].mxu0 %v948
        %v1041 = vpop.f32.mrb[0].mxu0
        %v1042 = vadd.f32 %v673, %v1041
        %v1043 = vpop.f32.mrb[0].mxu0
        %1044 = vmatprep.mubr.f32.mxu0 0.0
        %1045 = vmatmul.mubr.f32.gmra.mrb[0].mxu0 %v951
        %v1046 = vpop.f32.mrb[0].mxu0
        %v1047 = vadd.f32 %v673, %v1046
        %v1048 = vpop.f32.mrb[0].mxu0
        %1049 = vmatprep.mubr.f32.mxu0 0.0
        %1050 = vmatmul.mubr.f32.gmra.mrb[0].mxu0 %v954
        %v1051 = vpop.f32.mrb[0].mxu0
        %v1052 = vadd.f32 %v673, %v1051
        %v1053 = vpop.f32.mrb[0].mxu0
        %1054 = vmatprep.mubr.f32.mxu0 0.0
        %1055 = vmatmul.mubr.f32.gmra.mrb[0].mxu0 %v957
        %v1056 = vpop.f32.mrb[0].mxu0
        %v1057 = vadd.f32 %v673, %v1056
        %v1058 = vpop.f32.mrb[0].mxu0
        %1059 = vmatprep.mubr.f32.mxu0 0.0
        %1060 = vmatmul.mubr.f32.gmra.mrb[0].mxu0 %v960
        %v1061 = vpop.f32.mrb[0].mxu0
        %v1062 = vadd.f32 %v673, %v1061
        %v1063 = vpop.f32.mrb[0].mxu0
        %1064 = vmatprep.mubr.f32.mxu0 0.0
        %1065 = vmatmul.mubr.f32.gmra.mrb[0].mxu0 %v963
        %v1066 = vpop.f32.mrb[0].mxu0
        %v1067 = vadd.f32 %v673, %v1066
        %v1068 = vpop.f32.mrb[0].mxu0
        %1069 = vdwg.mxu0
        %1070 = vmatprep.subr.mxu0 0.0
        %1071 = vmatpush1.msra.mxu0 %v1032
        %1072 = vmatprep.subr.mxu0 0.0
        %1073 = vmatpush1.msra.mxu0 %v1037
        %1074 = vmatprep.subr.mxu0 0.0
        %1075 = vmatpush1.msra.mxu0 %v1042
        %1076 = vmatprep.subr.mxu0 0.0
        %1077 = vmatpush1.msra.mxu0 %v1047
        %1078 = vmatprep.subr.mxu0 0.0
        %1079 = vmatpush1.msra.mxu0 %v1052
        %1080 = vmatprep.subr.mxu0 0.0
        %1081 = vmatpush1.msra.mxu0 %v1057
        %1082 = vmatprep.subr.mxu0 0.0
        %1083 = vmatpush1.msra.mxu0 %v1062
        %1084 = vmatprep.subr.mxu0 0.0
        %1085 = vmatpush1.msra.mxu0 %v1067
        %1086 = vmatprep.subr.mxu0 0.0
        %1087 = vmatpush1.msra.mxu0 0.0
        %1088 = vmatprep.subr.mxu0 0.0
        %1089 = vmatpush1.msra.mxu0 0.0
        %1090 = vmatprep.subr.mxu0 0.0
        %1091 = vmatpush1.msra.mxu0 0.0
        %1092 = vmatprep.subr.mxu0 0.0
        %1093 = vmatpush1.msra.mxu0 0.0
        %1094 = vmatprep.subr.mxu0 0.0
        %1095 = vmatpush1.msra.mxu0 0.0
        %1096 = vmatprep.subr.mxu0 0.0
        %1097 = vmatpush1.msra.mxu0 0.0
        %1098 = vmatprep.subr.mxu0 0.0
        %1099 = vmatpush1.msra.mxu0 0.0
        %1100 = vmatprep.subr.mxu0 0.0
        %1101 = vmatpush1.msra.mxu0 0.0
        %1102 = vmatprep.subr.mxu0 0.0
        %1103 = vmatpush1.msra.mxu0 0.0
        %1104 = vmatprep.subr.mxu0 0.0
        %1105 = vmatpush1.msra.mxu0 0.0
        %1106 = vmatprep.subr.mxu0 0.0
        %1107 = vmatpush1.msra.mxu0 0.0
        %1108 = vmatprep.subr.mxu0 0.0
        %1109 = vmatpush1.msra.mxu0 0.0
        %1110 = vmatprep.subr.mxu0 0.0
        %1111 = vmatpush1.msra.mxu0 0.0
        %1112 = vmatprep.subr.mxu0 0.0
        %1113 = vmatpush1.msra.mxu0 0.0
        %1114 = vmatprep.subr.mxu0 0.0
        %1115 = vmatpush1.msra.mxu0 0.0
        %1116 = vmatprep.subr.mxu0 0.0
        %1117 = vmatpush1.msra.mxu0 0.0
        %1118 = vmatprep.subr.mxu0 0.0
        %1119 = vmatpush1.msra.mxu0 0.0
        %1120 = vmatprep.subr.mxu0 0.0
        %1121 = vmatpush1.msra.mxu0 0.0
        %1122 = vmatprep.subr.mxu0 0.0
        %1123 = vmatpush1.msra.mxu0 0.0
        %1124 = vmatprep.subr.mxu0 0.0
        %1125 = vmatpush1.msra.mxu0 0.0
        %1126 = vmatprep.subr.mxu0 0.0
        %1127 = vmatpush1.msra.mxu0 0.0
        %1128 = vmatprep.subr.mxu0 0.0
        %1129 = vmatpush1.msra.mxu0 0.0
        %1130 = vmatprep.subr.mxu0 0.0
        %1131 = vmatpush1.msra.mxu0 0.0
        %1132 = vmatprep.subr.mxu0 0.0
        %1133 = vmatpush1.msra.mxu0 0.0
        %1134 = vmatprep.mubr.f32.mxu0 0.0
        %1135 = vmatmul.mubr.f32.gmra.mrb[0].mxu0 %v813
        %v1136 = vpop.f32.mrb[0].mxu0
        %v1137 = vadd.f32 %v811, %v1136
        %v1138 = vpop.f32.mrb[0].mxu0
        %1139 = vmatprep.mubr.f32.mxu0 0.0
        %1140 = vmatmul.mubr.f32.gmra.mrb[0].mxu0 %v816
        %v1141 = vpop.f32.mrb[0].mxu0
        %v1142 = vadd.f32 %v811, %v1141
        %v1143 = vpop.f32.mrb[0].mxu0
        %1144 = vmatprep.mubr.f32.mxu0 0.0
        %1145 = vmatmul.mubr.f32.gmra.mrb[0].mxu0 %v819
        %v1146 = vpop.f32.mrb[0].mxu0
        %v1147 = vadd.f32 %v811, %v1146
        %v1148 = vpop.f32.mrb[0].mxu0
        %1149 = vmatprep.mubr.f32.mxu0 0.0
        %1150 = vmatmul.mubr.f32.gmra.mrb[0].mxu0 %v822
        %v1151 = vpop.f32.mrb[0].mxu0
        %v1152 = vadd.f32 %v811, %v1151
        %v1153 = vpop.f32.mrb[0].mxu0
        %1154 = vmatprep.mubr.f32.mxu0 0.0
        %1155 = vmatmul.mubr.f32.gmra.mrb[0].mxu0 %v825
        %v1156 = vpop.f32.mrb[0].mxu0
        %v1157 = vadd.f32 %v811, %v1156
        %v1158 = vpop.f32.mrb[0].mxu0
        %1159 = vmatprep.mubr.f32.mxu0 0.0
        %1160 = vmatmul.mubr.f32.gmra.mrb[0].mxu0 %v828
        %v1161 = vpop.f32.mrb[0].mxu0
        %v1162 = vadd.f32 %v811, %v1161
        %v1163 = vpop.f32.mrb[0].mxu0
        %1164 = vmatprep.mubr.f32.mxu0 0.0
        %1165 = vmatmul.mubr.f32.gmra.mrb[0].mxu0 %v831
        %v1166 = vpop.f32.mrb[0].mxu0
        %v1167 = vadd.f32 %v811, %v1166
        %v1168 = vpop.f32.mrb[0].mxu0
        %1169 = vmatprep.mubr.f32.mxu0 0.0
        %1170 = vmatmul.mubr.f32.gmra.mrb[0].mxu0 %v834
        %v1171 = vpop.f32.mrb[0].mxu0
        %v1172 = vadd.f32 %v811, %v1171
        %v1173 = vpop.f32.mrb[0].mxu0
        %1174 = vdwg.mxu0
        %1175 = vxpose.xlu0.b32.start [1/16] %v1137, 128
        %1176 = vxpose.xlu0.b32.cont [2/16] %v1142, 128
        %1177 = vxpose.xlu0.b32.cont [3/16] %v1147, 128
        %1178 = vxpose.xlu0.b32.cont [4/16] %v1152, 128
        %1179 = vxpose.xlu0.b32.cont [5/16] %v1157, 128
        %1180 = vxpose.xlu0.b32.cont [6/16] %v1162, 128
        %1181 = vxpose.xlu0.b32.cont [7/16] %v1167, 128
        %1182 = vxpose.xlu0.b32.cont [8/16] %v1172, 128
        %1183 = vxpose.xlu0.b32.cont [9/16] 0.0, 128
        %1184 = vxpose.xlu0.b32.cont [10/16] 0.0, 128
        %1185 = vxpose.xlu0.b32.cont [11/16] 0.0, 128
        %1186 = vxpose.xlu0.b32.cont [12/16] 0.0, 128
        %1187 = vxpose.xlu0.b32.cont [13/16] 0.0, 128
        %1188 = vxpose.xlu0.b32.cont [14/16] 0.0, 128
        %1189 = vxpose.xlu0.b32.cont [15/16] 0.0, 128
        %1190 = vxpose.xlu0.b32.end [16/16] 0.0, 128
        %v1191 = vpop.trf.xlu0
        %v1192 = vpop.trf.xlu0
        %v1193 = vpop.trf.xlu0
        %v1194 = vpop.trf.xlu0
        %v1195 = vpop.trf.xlu0
        %v1196 = vpop.trf.xlu0
        %v1197 = vpop.trf.xlu0
        %v1198 = vpop.trf.xlu0
        %v1199 = vpop.trf.xlu0
        %v1200 = vpop.trf.xlu0
        %v1201 = vpop.trf.xlu0
        %v1202 = vpop.trf.xlu0
        %v1203 = vpop.trf.xlu0
        %v1204 = vpop.trf.xlu0
        %v1205 = vpop.trf.xlu0
        %v1206 = vpop.trf.xlu0
        %vm1207 = vcmask 519168
        %1208 = vst.msk [vmem:[%s174] sm:$0xf] %vm1207, %v1191
        %s1209 = sand.u32 %s98, 1
        %s1210 = scalar_lea.sflag [#allocation3], %s1209
        %s1211 = sand.u32 %s98, 1
        %s1212 = smul.addr %s1211, 4
        %s1213 = scalar_lea.vmem [#allocation2], %s1212
        // Predicated region
        $region33: #{tpu_custom_call.1} parent=31 // pred_check
          %p1214 = pneg %p108
        $region34: #{tpu_custom_call.1} parent=31 // pred_check_branch
          %1216 = sbr.rel (%p1214) target = $region36
        $region35: #{tpu_custom_call.1} parent=31 // pred_region
          %s1218 = ssub.s32 64, 64
          %1219 = vsyncadd %s1210, %s1218
          %s1220 = smul.addr %s17, 64
          %s1221 = scalar_lea.hbm %s3, %s1220
          %s1223 = sshll.u32 %s1213, 4
          %s1224 = int_to_ptr.vmem [resolvable:$true] %s1223
          %1226 = dma.vmem_to_hbm [thread:$0]  %s1224, 64, %s1221, %s1210
        $region36: #{tpu_custom_call.1} parent=31 // pred_fallthru
          _
      $region32: #{tpu_custom_call.1} parent=5 // pred_fallthru
        _
      %p1227 = scmp.le.s32.totalorder 2, %s12
      // Predicated region
      $region37: #{tpu_custom_call.1} parent=5 // pred_check
        %p1228 = pneg %p1227
      $region38: #{tpu_custom_call.1} parent=5 // pred_check_branch
        %1230 = sbr.rel (%p1228) target = $region40
      $region39: #{tpu_custom_call.1} parent=5 // pred_region
        %s1231 = ssub.s32 %s12, 2
        // Predicated region
        $region41: #{tpu_custom_call.1} parent=39 // pred_check
          %p1232 = pneg %p114
        $region42: #{tpu_custom_call.1} parent=39 // pred_check_branch
          %1234 = sbr.rel (%p1232) target = $region44
        $region43: #{tpu_custom_call.1} parent=39 // pred_region
          %s1235 = sand.u32 %s99, 1
          %s1236 = scalar_lea.sflag [#allocation3], %s1235
          %s1237 = sand.u32 %s99, 1
          %s1238 = smul.addr %s1237, 4
          %s1239 = scalar_lea.vmem [#allocation2], %s1238
          %1240 = dma.done %s1236, 64
        $region44: #{tpu_custom_call.1} parent=39 // pred_fallthru
          _
      $region40: #{tpu_custom_call.1} parent=5 // pred_fallthru
        _
    $region6: #{tpu_custom_call.1} parent=1 // loop_footer
      %s16 = sadd.s32 1, %s12
    $region7: #{tpu_custom_call.1} parent=1 // loop_footer_branch
      %11 = sbr.rel target = $region3
    $region8: #{tpu_custom_call.1} parent=1 // loop_exit
      _
    %1241 = vsyncpa [#allocation3], 1
    %s1242 = scalar_lea.sflag [#allocation3], 1
    %1243 = vsyncpa %s1242, 1

</llo_original>
